<compile_context>
chip_gen: v5e
topology: v5e:2x2
jax: 0.10.0
libtpu: 0.0.40
codegen_flags: <defaults>
</compile_context>

<pallas_src>
import functools

import jax
import jax.numpy as jnp
import numpy as np
from jax.experimental import pallas as pl
from jax.experimental.pallas import tpu as pltpu


def _rnn_kernel(misc_ref, wts_ref, out_ref, hn_ref, *,
                n_layers, seq_len, hidden, output_size, mxu_dtype):
    nH = n_layers * hidden
    n_steps = seq_len + n_layers - 1

    # ---- unpack the two input slabs (one-time prologue work) ----
    misc = misc_ref[...]                              # (n_steps + 2 + 2*O, nH) f32
    x_pad = misc[0:n_steps, :]                        # lanes >= input_size are zero
    bias_wide = misc[n_steps:n_steps + 1, :]          # (1, nH)  b_ih + b_hh, all layers
    h0_wide = misc[n_steps + 1:n_steps + 2, :]        # (1, nH)  initial hidden, all layers
    r = n_steps + 2
    w_fc = misc[r:r + output_size, 0:hidden]          # (O, H)
    b_fc = misc[r + output_size:r + 2 * output_size, 0:seq_len]   # (O, seq) row-broadcast

    w0_wide = wts_ref[0:nH, :]                        # (nH, nH) padded input-proj weight
    w_big = wts_ref[nH:2 * nH, :]                     # (nH, nH) block-bidiagonal recurrence

    # Prologue: layer-0 projection of the whole padded sequence + all biases.
    # Pad rows (t >= seq_len) yield exactly bias_wide -> supplies the per-layer
    # biases for layers >= 1 during the drain steps.
    xproj = jnp.dot(x_pad.astype(mxu_dtype), w0_wide,
                    preferred_element_type=jnp.float32) + bias_wide  # (n_steps, nH) f32

    lane = jax.lax.broadcasted_iota(jnp.int32, (1, nH), 1)

    # ---- wavefront recurrence: exactly ONE MXU push per step ----
    h_wide = h0_wide                                  # (1, nH) f32 packed per-layer state
    y_rows = []                                       # final-layer outputs in time order
    for s in range(n_steps):
        pre = jnp.dot(h_wide.astype(mxu_dtype), w_big,
                      preferred_element_type=jnp.float32) + xproj[s:s + 1, :]
        h_new = jnp.tanh(pre)                         # (1, nH) f32 (EUP)
        lo = max(0, s - seq_len + 1)                  # active layers lo..hi (static ints)
        hi = min(n_layers - 1, s)
        if lo == 0 and hi == n_layers - 1:
            h_wide = h_new
        else:                                         # fill/drain: freeze inactive chunks
            mask = (lane >= lo * hidden) & (lane < (hi + 1) * hidden)
            h_wide = jnp.where(mask, h_new, h_wide)
        if s >= n_layers - 1:                         # last layer active: emit y[t], t=s-(nL-1)
            y_rows.append(h_new[:, (n_layers - 1) * hidden:nH])

    hn_ref[...] = h_wide                              # single (1, nH) lane-dense store

    # Dropout(p=0.2) is identity at inference.  Fused Linear head, lane-dense out.
    y_all = jnp.concatenate(y_rows, axis=0)           # (seq, H) f32
    out_ref[...] = (jnp.dot(w_fc, y_all.T, preferred_element_type=jnp.float32)
                    + b_fc)                           # (O, seq)


def rnn_forward(x, hn, params, *, mxu_dtype=jnp.bfloat16):
    seq_len, input_size = x.shape
    n_layers, _, hidden = hn.shape
    output_size = params["w_fc"].shape[0]
    nH = n_layers * hidden
    n_steps = seq_len + n_layers - 1
    f32 = jnp.float32

    # ---- weight slab (mxu_dtype): [W0_wide ; W_big], each (nH, nH) ----
    w0_wide = jnp.zeros((nH, nH), f32).at[:input_size, :hidden].set(params["w_ih0"].T)
    w_big = jnp.zeros((nH, nH), f32)
    for l in range(n_layers):
        w_big = w_big.at[l * hidden:(l + 1) * hidden,
                         l * hidden:(l + 1) * hidden].set(params["w_hh"][l].T)
        if l >= 1:
            w_big = w_big.at[(l - 1) * hidden:l * hidden,
                             l * hidden:(l + 1) * hidden].set(params["w_ih_rest"][l - 1].T)
    wts = jnp.concatenate([w0_wide, w_big], axis=0).astype(mxu_dtype)   # (2*nH, nH)

    # ---- misc slab (f32, lane width nH): x_pad | bias | h0 | w_fc | b_fc ----
    x_pad = jnp.zeros((n_steps, nH), f32).at[:seq_len, :input_size].set(x.astype(f32))
    bias_wide = (params["b_ih"] + params["b_hh"]).reshape(1, nH)
    h0_wide = hn.astype(f32).reshape(1, nH)
    w_fc_pad = jnp.zeros((output_size, nH), f32).at[:, :hidden].set(params["w_fc"])
    b_fc_rows = jnp.broadcast_to(params["b_fc"].reshape(output_size, 1),
                                 (output_size, nH)).astype(f32)
    misc = jnp.concatenate([x_pad, bias_wide, h0_wide, w_fc_pad, b_fc_rows], axis=0)

    kernel = functools.partial(_rnn_kernel, n_layers=n_layers, seq_len=seq_len,
                               hidden=hidden, output_size=output_size,
                               mxu_dtype=mxu_dtype)
    vmem = pl.BlockSpec(memory_space=pltpu.MemorySpace.VMEM)
    out_t, hn_wide = pl.pallas_call(
        kernel,
        out_shape=(jax.ShapeDtypeStruct((output_size, seq_len), jnp.float32),
                   jax.ShapeDtypeStruct((1, nH), jnp.float32)),
        in_specs=[vmem, vmem],
        out_specs=(vmem, vmem),
    )(misc, wts)

    # Wrapper-side layout plumbing: (O, seq) -> (seq, O); (1, nL*H) -> (nL, 1, H).
    return out_t.T, hn_wide.reshape(n_layers, 1, hidden)


def init_params(key, input_size, output_size, hidden, n_layers):
    """Deterministic params matching PyTorch default init U(-1/sqrt(hidden), 1/sqrt(hidden))."""
    ks = jax.random.split(key, 7)
    k = 1.0 / float(np.sqrt(hidden))
    n_rest = max(n_layers - 1, 1)
    return {
        "w_ih0":     jax.random.uniform(ks[0], (hidden, input_size), jnp.float32, -k, k),
        "w_ih_rest": jax.random.uniform(ks[1], (n_rest, hidden, hidden), jnp.float32, -k, k),
        "w_hh":      jax.random.uniform(ks[2], (n_layers, hidden, hidden), jnp.float32, -k, k),
        "b_ih":      jax.random.uniform(ks[3], (n_layers, hidden), jnp.float32, -k, k),
        "b_hh":      jax.random.uniform(ks[4], (n_layers, hidden), jnp.float32, -k, k),
        "w_fc":      jax.random.uniform(ks[5], (output_size, hidden), jnp.float32, -k, k),
        "b_fc":      jax.random.uniform(ks[6], (1, output_size), jnp.float32, -k, k),
    }


def rnn_reference(x, hn, params):
    """Pure-JAX reference matching torch.nn.RNN(tanh) + Linear semantics."""
    n_layers = params["w_hh"].shape[0]
    layer_in = x
    finals = []
    for l in range(n_layers):
        w_ih = params["w_ih0"] if l == 0 else params["w_ih_rest"][l - 1]
        w_hh = params["w_hh"][l]
        b = params["b_ih"][l] + params["b_hh"][l]
        h = hn[l, 0]
        outs = []
        for t in range(x.shape[0]):
            h = jnp.tanh(layer_in[t] @ w_ih.T + b + h @ w_hh.T)
            outs.append(h)
        layer_in = jnp.stack(outs)
        finals.append(h)
    out = layer_in @ params["w_fc"].T + params["b_fc"]
    return out, jnp.stack(finals)[:, None, :]


if __name__ == "__main__":
    # Shapes consistent with the module: RNN(input_size=8, output_size=1,
    # n_features=32, n_layers=2), x of shape (seq=8, input_size=8), batch=1.
    input_size, output_size, hidden, n_layers, seq_len = 8, 1, 32, 2, 8

    key = jax.random.PRNGKey(0)
    k_x, k_p = jax.random.split(key)
    x = jax.random.normal(k_x, (seq_len, input_size), jnp.float32)
    hn = jnp.zeros((n_layers, 1, hidden), jnp.float32)          # init_hidden()
    params = init_params(k_p, input_size, output_size, hidden, n_layers)

    # Fast path (bf16 MXU operands, f32 accumulate/elementwise) -- the default.
    out_bf, hn_bf = rnn_forward(x, hn, params)
    out_bf = jax.block_until_ready(out_bf)
    hn_bf = jax.block_until_ready(hn_bf)

    # Exact path (f32 MXU operands) to validate the algorithm bit-tightly.
    out_f32, hn_f32 = rnn_forward(x, hn, params, mxu_dtype=jnp.float32)
    out_f32 = jax.block_until_ready(out_f32)
    hn_f32 = jax.block_until_ready(hn_f32)

    ref_out, ref_hn = rnn_reference(x, hn, params)

    # f32 kernel must match the reference tightly.
    np.testing.assert_allclose(np.asarray(out_f32), np.asarray(ref_out), rtol=1e-4, atol=1e-4)
    np.testing.assert_allclose(np.asarray(hn_f32), np.asarray(ref_hn), rtol=1e-4, atol=1e-4)
    # bf16-MXU kernel: tolerance loosened for bf16 operand rounding through the
    # serial tanh recurrence (see perf-review correctness note).
    np.testing.assert_allclose(np.asarray(out_bf), np.asarray(ref_out), rtol=5e-2, atol=5e-2)
    np.testing.assert_allclose(np.asarray(hn_bf), np.asarray(ref_hn), rtol=5e-2, atol=5e-2)

    assert out_bf.shape == (seq_len, output_size)
    assert hn_bf.shape == (n_layers, 1, hidden)
    print("KERNEL_OK")
</pallas_src>

<mosaic_0001>
module attributes {stable_mosaic.version = 11 : i64} {
  func.func @_rnn_kernel(%arg0: memref<13x64xf32, #tpu.memory_space<vmem>>, %arg1: memref<128x64xbf16, #tpu.memory_space<vmem>>, %arg2: memref<1x8xf32, #tpu.memory_space<vmem>>, %arg3: memref<1x64xf32, #tpu.memory_space<vmem>>) attributes {dimension_semantics = [], scalar_prefetch = 0 : i64, scratch_operands = 0 : i64, tpu.core_type = #tpu.core_type<tc>} {
    %c0 = arith.constant 0 : index
    %c0_0 = arith.constant 0 : index
    %0 = vector.load %arg0[%c0, %c0_0] : memref<13x64xf32, #tpu.memory_space<vmem>>, vector<13x64xf32>
    %1 = vector.extract_strided_slice %0 {offsets = [0, 0], sizes = [9, 64], strides = [1, 1]} : vector<13x64xf32> to vector<9x64xf32>
    %2 = vector.extract_strided_slice %0 {offsets = [9, 0], sizes = [1, 64], strides = [1, 1]} : vector<13x64xf32> to vector<1x64xf32>
    %3 = vector.extract_strided_slice %0 {offsets = [10, 0], sizes = [1, 64], strides = [1, 1]} : vector<13x64xf32> to vector<1x64xf32>
    %4 = vector.extract_strided_slice %0 {offsets = [11, 0], sizes = [1, 32], strides = [1, 1]} : vector<13x64xf32> to vector<1x32xf32>
    %5 = vector.extract_strided_slice %0 {offsets = [12, 0], sizes = [1, 8], strides = [1, 1]} : vector<13x64xf32> to vector<1x8xf32>
    %c0_1 = arith.constant 0 : index
    %c0_2 = arith.constant 0 : index
    %6 = vector.load %arg1[%c0_1, %c0_2] : memref<128x64xbf16, #tpu.memory_space<vmem>>, vector<64x64xbf16>
    %c64 = arith.constant 64 : index
    %c0_3 = arith.constant 0 : index
    %7 = vector.load %arg1[%c64, %c0_3] : memref<128x64xbf16, #tpu.memory_space<vmem>>, vector<64x64xbf16>
    %8 = arith.truncf %1 : vector<9x64xf32> to vector<9x64xbf16>
    %cst = arith.constant dense<0.000000e+00> : vector<9x64xf32>
    %9 = tpu.matmul %8, %6, %cst {dimension_numbers = #tpu.dot_dimension_numbers<[1], [0], [0], [1], [0, 0, 1, 1], [], []>} : vector<9x64xbf16>, vector<64x64xbf16>, vector<9x64xf32> -> vector<9x64xf32>
    %10 = vector.broadcast %2 : vector<1x64xf32> to vector<9x64xf32>
    %11 = arith.addf %9, %10 : vector<9x64xf32>
    %12 = tpu.iota {dimensions = array<i32: 1>} : vector<1x64xi32>
    %13 = arith.truncf %3 : vector<1x64xf32> to vector<1x64xbf16>
    %cst_4 = arith.constant dense<0.000000e+00> : vector<1x64xf32>
    %14 = tpu.matmul %13, %7, %cst_4 {dimension_numbers = #tpu.dot_dimension_numbers<[1], [0], [0], [1], [0, 0, 1, 1], [], []>} : vector<1x64xbf16>, vector<64x64xbf16>, vector<1x64xf32> -> vector<1x64xf32>
    %15 = vector.extract_strided_slice %11 {offsets = [0, 0], sizes = [1, 64], strides = [1, 1]} : vector<9x64xf32> to vector<1x64xf32>
    %16 = arith.addf %14, %15 : vector<1x64xf32>
    %17 = math.tanh %16 : vector<1x64xf32>
    %c0_i32 = arith.constant 0 : i32
    %18 = vector.broadcast %c0_i32 : i32 to vector<1x64xi32>
    %19 = arith.cmpi sge, %12, %18 : vector<1x64xi32>
    %c32_i32 = arith.constant 32 : i32
    %20 = vector.broadcast %c32_i32 : i32 to vector<1x64xi32>
    %21 = arith.cmpi slt, %12, %20 : vector<1x64xi32>
    %22 = arith.andi %19, %21 : vector<1x64xi1>
    %23 = arith.select %22, %17, %3 : vector<1x64xi1>, vector<1x64xf32>
    %24 = arith.truncf %23 : vector<1x64xf32> to vector<1x64xbf16>
    %cst_5 = arith.constant dense<0.000000e+00> : vector<1x64xf32>
    %25 = tpu.matmul %24, %7, %cst_5 {dimension_numbers = #tpu.dot_dimension_numbers<[1], [0], [0], [1], [0, 0, 1, 1], [], []>} : vector<1x64xbf16>, vector<64x64xbf16>, vector<1x64xf32> -> vector<1x64xf32>
    %26 = vector.extract_strided_slice %11 {offsets = [1, 0], sizes = [1, 64], strides = [1, 1]} : vector<9x64xf32> to vector<1x64xf32>
    %27 = arith.addf %25, %26 : vector<1x64xf32>
    %28 = math.tanh %27 : vector<1x64xf32>
    %29 = vector.extract_strided_slice %28 {offsets = [0, 32], sizes = [1, 32], strides = [1, 1]} : vector<1x64xf32> to vector<1x32xf32>
    %30 = arith.truncf %28 : vector<1x64xf32> to vector<1x64xbf16>
    %cst_6 = arith.constant dense<0.000000e+00> : vector<1x64xf32>
    %31 = tpu.matmul %30, %7, %cst_6 {dimension_numbers = #tpu.dot_dimension_numbers<[1], [0], [0], [1], [0, 0, 1, 1], [], []>} : vector<1x64xbf16>, vector<64x64xbf16>, vector<1x64xf32> -> vector<1x64xf32>
    %32 = vector.extract_strided_slice %11 {offsets = [2, 0], sizes = [1, 64], strides = [1, 1]} : vector<9x64xf32> to vector<1x64xf32>
    %33 = arith.addf %31, %32 : vector<1x64xf32>
    %34 = math.tanh %33 : vector<1x64xf32>
    %35 = vector.extract_strided_slice %34 {offsets = [0, 32], sizes = [1, 32], strides = [1, 1]} : vector<1x64xf32> to vector<1x32xf32>
    %36 = arith.truncf %34 : vector<1x64xf32> to vector<1x64xbf16>
    %cst_7 = arith.constant dense<0.000000e+00> : vector<1x64xf32>
    %37 = tpu.matmul %36, %7, %cst_7 {dimension_numbers = #tpu.dot_dimension_numbers<[1], [0], [0], [1], [0, 0, 1, 1], [], []>} : vector<1x64xbf16>, vector<64x64xbf16>, vector<1x64xf32> -> vector<1x64xf32>
    %38 = vector.extract_strided_slice %11 {offsets = [3, 0], sizes = [1, 64], strides = [1, 1]} : vector<9x64xf32> to vector<1x64xf32>
    %39 = arith.addf %37, %38 : vector<1x64xf32>
    %40 = math.tanh %39 : vector<1x64xf32>
    %41 = vector.extract_strided_slice %40 {offsets = [0, 32], sizes = [1, 32], strides = [1, 1]} : vector<1x64xf32> to vector<1x32xf32>
    %42 = arith.truncf %40 : vector<1x64xf32> to vector<1x64xbf16>
    %cst_8 = arith.constant dense<0.000000e+00> : vector<1x64xf32>
    %43 = tpu.matmul %42, %7, %cst_8 {dimension_numbers = #tpu.dot_dimension_numbers<[1], [0], [0], [1], [0, 0, 1, 1], [], []>} : vector<1x64xbf16>, vector<64x64xbf16>, vector<1x64xf32> -> vector<1x64xf32>
    %44 = vector.extract_strided_slice %11 {offsets = [4, 0], sizes = [1, 64], strides = [1, 1]} : vector<9x64xf32> to vector<1x64xf32>
    %45 = arith.addf %43, %44 : vector<1x64xf32>
    %46 = math.tanh %45 : vector<1x64xf32>
    %47 = vector.extract_strided_slice %46 {offsets = [0, 32], sizes = [1, 32], strides = [1, 1]} : vector<1x64xf32> to vector<1x32xf32>
    %48 = arith.truncf %46 : vector<1x64xf32> to vector<1x64xbf16>
    %cst_9 = arith.constant dense<0.000000e+00> : vector<1x64xf32>
    %49 = tpu.matmul %48, %7, %cst_9 {dimension_numbers = #tpu.dot_dimension_numbers<[1], [0], [0], [1], [0, 0, 1, 1], [], []>} : vector<1x64xbf16>, vector<64x64xbf16>, vector<1x64xf32> -> vector<1x64xf32>
    %50 = vector.extract_strided_slice %11 {offsets = [5, 0], sizes = [1, 64], strides = [1, 1]} : vector<9x64xf32> to vector<1x64xf32>
    %51 = arith.addf %49, %50 : vector<1x64xf32>
    %52 = math.tanh %51 : vector<1x64xf32>
    %53 = vector.extract_strided_slice %52 {offsets = [0, 32], sizes = [1, 32], strides = [1, 1]} : vector<1x64xf32> to vector<1x32xf32>
    %54 = arith.truncf %52 : vector<1x64xf32> to vector<1x64xbf16>
    %cst_10 = arith.constant dense<0.000000e+00> : vector<1x64xf32>
    %55 = tpu.matmul %54, %7, %cst_10 {dimension_numbers = #tpu.dot_dimension_numbers<[1], [0], [0], [1], [0, 0, 1, 1], [], []>} : vector<1x64xbf16>, vector<64x64xbf16>, vector<1x64xf32> -> vector<1x64xf32>
    %56 = vector.extract_strided_slice %11 {offsets = [6, 0], sizes = [1, 64], strides = [1, 1]} : vector<9x64xf32> to vector<1x64xf32>
    %57 = arith.addf %55, %56 : vector<1x64xf32>
    %58 = math.tanh %57 : vector<1x64xf32>
    %59 = vector.extract_strided_slice %58 {offsets = [0, 32], sizes = [1, 32], strides = [1, 1]} : vector<1x64xf32> to vector<1x32xf32>
    %60 = arith.truncf %58 : vector<1x64xf32> to vector<1x64xbf16>
    %cst_11 = arith.constant dense<0.000000e+00> : vector<1x64xf32>
    %61 = tpu.matmul %60, %7, %cst_11 {dimension_numbers = #tpu.dot_dimension_numbers<[1], [0], [0], [1], [0, 0, 1, 1], [], []>} : vector<1x64xbf16>, vector<64x64xbf16>, vector<1x64xf32> -> vector<1x64xf32>
    %62 = vector.extract_strided_slice %11 {offsets = [7, 0], sizes = [1, 64], strides = [1, 1]} : vector<9x64xf32> to vector<1x64xf32>
    %63 = arith.addf %61, %62 : vector<1x64xf32>
    %64 = math.tanh %63 : vector<1x64xf32>
    %65 = vector.extract_strided_slice %64 {offsets = [0, 32], sizes = [1, 32], strides = [1, 1]} : vector<1x64xf32> to vector<1x32xf32>
    %66 = arith.truncf %64 : vector<1x64xf32> to vector<1x64xbf16>
    %cst_12 = arith.constant dense<0.000000e+00> : vector<1x64xf32>
    %67 = tpu.matmul %66, %7, %cst_12 {dimension_numbers = #tpu.dot_dimension_numbers<[1], [0], [0], [1], [0, 0, 1, 1], [], []>} : vector<1x64xbf16>, vector<64x64xbf16>, vector<1x64xf32> -> vector<1x64xf32>
    %68 = vector.extract_strided_slice %11 {offsets = [8, 0], sizes = [1, 64], strides = [1, 1]} : vector<9x64xf32> to vector<1x64xf32>
    %69 = arith.addf %67, %68 : vector<1x64xf32>
    %70 = math.tanh %69 : vector<1x64xf32>
    %c32_i32_13 = arith.constant 32 : i32
    %71 = vector.broadcast %c32_i32_13 : i32 to vector<1x64xi32>
    %72 = arith.cmpi sge, %12, %71 : vector<1x64xi32>
    %c64_i32 = arith.constant 64 : i32
    %73 = vector.broadcast %c64_i32 : i32 to vector<1x64xi32>
    %74 = arith.cmpi slt, %12, %73 : vector<1x64xi32>
    %75 = arith.andi %72, %74 : vector<1x64xi1>
    %76 = arith.select %75, %70, %64 : vector<1x64xi1>, vector<1x64xf32>
    %77 = vector.extract_strided_slice %70 {offsets = [0, 32], sizes = [1, 32], strides = [1, 1]} : vector<1x64xf32> to vector<1x32xf32>
    %c0_14 = arith.constant 0 : index
    %c0_15 = arith.constant 0 : index
    %78 = vector.load %arg3[%c0_14, %c0_15] : memref<1x64xf32, #tpu.memory_space<vmem>>, vector<1x64xf32>
    tpu.vector_store %arg3[%c0_14, %c0_15], %76 {strides = array<i32>} : memref<1x64xf32, #tpu.memory_space<vmem>>, vector<1x64xf32>,
    %79 = tpu.concatenate %29, %35, %41, %47, %53, %59, %65, %77 in 0 : vector<1x32xf32>, vector<1x32xf32>, vector<1x32xf32>, vector<1x32xf32>, vector<1x32xf32>, vector<1x32xf32>, vector<1x32xf32>, vector<1x32xf32> -> vector<8x32xf32>
    %80 = tpu.transpose %79, [1, 0] : vector<8x32xf32> -> vector<32x8xf32>
    %cst_16 = arith.constant dense<0.000000e+00> : vector<1x8xf32>
    %81 = tpu.matmul %4, %80, %cst_16 {dimension_numbers = #tpu.dot_dimension_numbers<[1], [0], [0], [1], [0, 0, 1, 1], [], []>} : vector<1x32xf32>, vector<32x8xf32>, vector<1x8xf32> -> vector<1x8xf32>
    %82 = arith.addf %81, %5 : vector<1x8xf32>
    %c0_17 = arith.constant 0 : index
    %c0_18 = arith.constant 0 : index
    %83 = vector.load %arg2[%c0_17, %c0_18] : memref<1x8xf32, #tpu.memory_space<vmem>>, vector<1x8xf32>
    tpu.vector_store %arg2[%c0_17, %c0_18], %82 {strides = array<i32>} : memref<1x8xf32, #tpu.memory_space<vmem>>, vector<1x8xf32>,
    return
  }
}

</mosaic_0001>

<llo_original>
// kernel: tpu_custom_call.1
$region0: #{tpu_custom_call.1}
  #allocation0 [shape = 'u32[]', space=smem, size = 0x4, offset = 0x4, fixed_abs, tag = 'smem constant byte address 0x4 - core index']
  #allocation1 [shape = 'u32[72,128]{1,0:T(1,128)}', space=vmem, size = 0x9000, scoped, tag = 'internal scratch']
  %s0 = inlined_call_operand.vmem [shape: f32[13,64], index: 0, kind: input, shape index: {}]
  %s1 = inlined_call_operand.vmem [shape: bf16[128,64], index: 1, kind: input, shape index: {}]
  %s2 = inlined_call_operand.hbm [shape: f32[1,8], index: 2, kind: output, shape index: {0}]
  %s3 = inlined_call_operand.hbm [shape: f32[1,64], index: 3, kind: output, shape index: {1}]
  %4 = xla_tuple %s2, %s3
  %s5 = sld [smem:[#allocation0]]
  $region26: #{tpu_custom_call.1} parent=0
    _
  %s7 = ssub.s32 1, %s5
  %s8 = scalar_select 0, %s7, %s5
  $region1: #{tpu_custom_call.1} parent=0
    #allocation2 [shape = 'u8[512]{0}', space=vmem, size = 0x400, scoped, tag = 'output window, operand 0, single buffered']
    #allocation3 [shape = 's32[1]{0}', space=sflag, size = 0x4, scoped, tag = 'scoped memory for tpu_custom_call.1']
    #allocation4 [shape = 'u8[512]{0}', space=vmem, size = 0x400, scoped, tag = 'output window, operand 1, single buffered']
    #allocation5 [shape = 's32[1]{0}', space=sflag, size = 0x4, scoped, tag = 'scoped memory for tpu_custom_call.1']
    %9 = vsyncpa [#allocation3], 0
    %10 = vsyncpa [#allocation5], 0
    // Predicated region
    $region2: #{tpu_custom_call.1} parent=1 // pred_check
      _
    $region3: #{tpu_custom_call.1} parent=1 // pred_check_branch
      %12 = sbr.rel (0) target = $region5
    $region4: #{tpu_custom_call.1} parent=1 // pred_region
      _
    $region5: #{tpu_custom_call.1} parent=1 // pred_fallthru
      _
    // Predicated region
    $region6: #{tpu_custom_call.1} parent=1 // pred_check
      _
    $region7: #{tpu_custom_call.1} parent=1 // pred_check_branch
      %14 = sbr.rel (0) target = $region9
    $region8: #{tpu_custom_call.1} parent=1 // pred_region
      _
    $region9: #{tpu_custom_call.1} parent=1 // pred_fallthru
      _
    %v16 = vld [vmem:[%s0] sm:$0xff]
    %v17 = vld [vmem:[%s0 + $0x8] sm:$0x1f]
    %v18 = vld [vmem:[%s1] sm:$0xf]
    %v19 = vld [vmem:[%s1 + $0x4] sm:$0xf]
    %v20 = vld [vmem:[%s1 + $0x8] sm:$0xf]
    %v21 = vld [vmem:[%s1 + $0xc] sm:$0xf]
    %v22 = vld [vmem:[%s1 + $0x10] sm:$0xf]
    %v23 = vld [vmem:[%s1 + $0x14] sm:$0xf]
    %v24 = vld [vmem:[%s1 + $0x18] sm:$0xf]
    %v25 = vld [vmem:[%s1 + $0x1c] sm:$0xf]
    %v26 = vld [vmem:[%s1 + $0x20] sm:$0xf]
    %v27 = vld [vmem:[%s1 + $0x24] sm:$0xf]
    %v28 = vld [vmem:[%s1 + $0x28] sm:$0xf]
    %v29 = vld [vmem:[%s1 + $0x2c] sm:$0xf]
    %v30 = vld [vmem:[%s1 + $0x30] sm:$0xf]
    %v31 = vld [vmem:[%s1 + $0x34] sm:$0xf]
    %v32 = vld [vmem:[%s1 + $0x38] sm:$0xf]
    %v33 = vld [vmem:[%s1 + $0x3c] sm:$0xf]
    %v34 = vpack.c.bf16 %v17, %v16
    %v35 = vperm.slane %v17, 1
    %v44 = vunpack.c.l.b16 %v18
    %v45 = vunpack.c.l.b16 %v19
    %v46 = vunpack.c.l.b16 %v20
    %v47 = vunpack.c.l.b16 %v21
    %v48 = vunpack.c.l.b16 %v22
    %v49 = vunpack.c.l.b16 %v23
    %v50 = vunpack.c.l.b16 %v24
    %v51 = vunpack.c.l.b16 %v25
    %v52 = vpack.c.b16 %v45, %v44
    %v53 = vpack.c.b16 %v47, %v46
    %v54 = vpack.c.b16 %v49, %v48
    %v55 = vpack.c.b16 %v51, %v50
    %vm60 = vcmask 523264
    %v62 = vsel %vm60, %v34, 0
    %64 = vmatpush.bf16.msra.mxu0 0
    %65 = vmatpush.bf16.msra.mxu0 0
    %66 = vmatpush.bf16.msra.mxu0 0
    %67 = vmatpush.bf16.msra.mxu0 0
    %68 = vmatpush.bf16.msra.mxu0 %v55
    %69 = vmatpush.bf16.msra.mxu0 %v54
    %70 = vmatpush.bf16.msra.mxu0 %v53
    %71 = vmatpush.bf16.msra.mxu0 %v52
    %72 = vmatmul.bf16.gmra.mxu0 %v62
    %v73 = vpop.f32.mrf.mxu0
    %v74 = vadd.f32 %v35, %v73
    %v75 = vpop.f32.mrf.mxu0
    %v76 = vadd.f32 %v35, %v75
    %77 = vdwg.mxu0
    %v78 = vlaneseq
    %v79 = vand.u32 %v78, 127
    %v80 = vpack.c.bf16 %v17, %v17
    %v82 = vrot.slane %v80, 1
    %v91 = vunpack.c.l.b16 %v26
    %v92 = vunpack.c.l.b16 %v27
    %v93 = vunpack.c.l.b16 %v28
    %v94 = vunpack.c.l.b16 %v29
    %v95 = vunpack.c.l.b16 %v30
    %v96 = vunpack.c.l.b16 %v31
    %v97 = vunpack.c.l.b16 %v32
    %v98 = vunpack.c.l.b16 %v33
    %v99 = vpack.c.b16 %v92, %v91
    %v100 = vpack.c.b16 %v94, %v93
    %v101 = vpack.c.b16 %v96, %v95
    %v102 = vpack.c.b16 %v98, %v97
    %v108 = vsel %vm60, %v82, 0
    %110 = vmatpush.bf16.msra.mxu0 0
    %111 = vmatpush.bf16.msra.mxu0 0
    %112 = vmatpush.bf16.msra.mxu0 0
    %113 = vmatpush.bf16.msra.mxu0 0
    %114 = vmatpush.bf16.msra.mxu0 %v102
    %115 = vmatpush.bf16.msra.mxu0 %v101
    %116 = vmatpush.bf16.msra.mxu0 %v100
    %117 = vmatpush.bf16.msra.mxu0 %v99
    %118 = vmatmul.bf16.gmra.mxu0 %v108
    %v119 = vpop.f32.mrf.mxu0
    %v120 = vadd.f32 %v74, %v119
    %v121 = vpop.f32.mrf.mxu0
    %122 = vdwg.mxu0
    %v123 = vtanh.pop %v120
    %vm124 = vcmp.ge.s32.totalorder %v79, 0
    %vm125 = vcmp.lt.s32.totalorder %v79, 32
    %vm126 = vmand %vm124, %vm125
    %v128 = vrot.slane %v17, 2
    %v130 = vsel %vm126, %v123, %v128
    %v131 = vpack.c.bf16 %v130, %v130
    %v133 = vrot.slane %v74, 1
    %v136 = vsel %vm60, %v131, 0
    %138 = vmatpush.bf16.msra.mxu0 0
    %139 = vmatpush.bf16.msra.mxu0 0
    %140 = vmatpush.bf16.msra.mxu0 0
    %141 = vmatpush.bf16.msra.mxu0 0
    %142 = vmatpush.bf16.msra.mxu0 %v102
    %143 = vmatpush.bf16.msra.mxu0 %v101
    %144 = vmatpush.bf16.msra.mxu0 %v100
    %145 = vmatpush.bf16.msra.mxu0 %v99
    %146 = vmatmul.bf16.gmra.mxu0 %v136
    %v147 = vpop.f32.mrf.mxu0
    %v148 = vadd.f32 %v133, %v147
    %v149 = vpop.f32.mrf.mxu0
    %150 = vdwg.mxu0
    %v151 = vtanh.pop %v148
    %v152 = vpack.c.bf16 %v151, %v151
    %v153 = vrot.slane %v74, 2
    %v156 = vsel %vm60, %v152, 0
    %158 = vmatpush.bf16.msra.mxu0 0
    %159 = vmatpush.bf16.msra.mxu0 0
    %160 = vmatpush.bf16.msra.mxu0 0
    %161 = vmatpush.bf16.msra.mxu0 0
    %162 = vmatpush.bf16.msra.mxu0 %v102
    %163 = vmatpush.bf16.msra.mxu0 %v101
    %164 = vmatpush.bf16.msra.mxu0 %v100
    %165 = vmatpush.bf16.msra.mxu0 %v99
    %166 = vmatmul.bf16.gmra.mxu0 %v156
    %v167 = vpop.f32.mrf.mxu0
    %v168 = vadd.f32 %v153, %v167
    %v169 = vpop.f32.mrf.mxu0
    %170 = vdwg.mxu0
    %v171 = vtanh.pop %v168
    %v172 = vpack.c.bf16 %v171, %v171
    %v173 = vrot.slane %v74, 3
    %v176 = vsel %vm60, %v172, 0
    %178 = vmatpush.bf16.msra.mxu0 0
    %179 = vmatpush.bf16.msra.mxu0 0
    %180 = vmatpush.bf16.msra.mxu0 0
    %181 = vmatpush.bf16.msra.mxu0 0
    %182 = vmatpush.bf16.msra.mxu0 %v102
    %183 = vmatpush.bf16.msra.mxu0 %v101
    %184 = vmatpush.bf16.msra.mxu0 %v100
    %185 = vmatpush.bf16.msra.mxu0 %v99
    %186 = vmatmul.bf16.gmra.mxu0 %v176
    %v187 = vpop.f32.mrf.mxu0
    %v188 = vadd.f32 %v173, %v187
    %v189 = vpop.f32.mrf.mxu0
    %190 = vdwg.mxu0
    %v191 = vtanh.pop %v188
    %v192 = vpack.c.bf16 %v191, %v191
    %v193 = vrot.slane %v74, 4
    %v196 = vsel %vm60, %v192, 0
    %198 = vmatpush.bf16.msra.mxu0 0
    %199 = vmatpush.bf16.msra.mxu0 0
    %200 = vmatpush.bf16.msra.mxu0 0
    %201 = vmatpush.bf16.msra.mxu0 0
    %202 = vmatpush.bf16.msra.mxu0 %v102
    %203 = vmatpush.bf16.msra.mxu0 %v101
    %204 = vmatpush.bf16.msra.mxu0 %v100
    %205 = vmatpush.bf16.msra.mxu0 %v99
    %206 = vmatmul.bf16.gmra.mxu0 %v196
    %v207 = vpop.f32.mrf.mxu0
    %v208 = vadd.f32 %v193, %v207
    %v209 = vpop.f32.mrf.mxu0
    %210 = vdwg.mxu0
    %v211 = vtanh.pop %v208
    %v212 = vpack.c.bf16 %v211, %v211
    %v213 = vrot.slane %v74, 5
    %v216 = vsel %vm60, %v212, 0
    %218 = vmatpush.bf16.msra.mxu0 0
    %219 = vmatpush.bf16.msra.mxu0 0
    %220 = vmatpush.bf16.msra.mxu0 0
    %221 = vmatpush.bf16.msra.mxu0 0
    %222 = vmatpush.bf16.msra.mxu0 %v102
    %223 = vmatpush.bf16.msra.mxu0 %v101
    %224 = vmatpush.bf16.msra.mxu0 %v100
    %225 = vmatpush.bf16.msra.mxu0 %v99
    %226 = vmatmul.bf16.gmra.mxu0 %v216
    %v227 = vpop.f32.mrf.mxu0
    %v228 = vadd.f32 %v213, %v227
    %v229 = vpop.f32.mrf.mxu0
    %230 = vdwg.mxu0
    %v231 = vtanh.pop %v228
    %v232 = vpack.c.bf16 %v231, %v231
    %v233 = vrot.slane %v74, 6
    %v236 = vsel %vm60, %v232, 0
    %238 = vmatpush.bf16.msra.mxu0 0
    %239 = vmatpush.bf16.msra.mxu0 0
    %240 = vmatpush.bf16.msra.mxu0 0
    %241 = vmatpush.bf16.msra.mxu0 0
    %242 = vmatpush.bf16.msra.mxu0 %v102
    %243 = vmatpush.bf16.msra.mxu0 %v101
    %244 = vmatpush.bf16.msra.mxu0 %v100
    %245 = vmatpush.bf16.msra.mxu0 %v99
    %246 = vmatmul.bf16.gmra.mxu0 %v236
    %v247 = vpop.f32.mrf.mxu0
    %v248 = vadd.f32 %v233, %v247
    %v249 = vpop.f32.mrf.mxu0
    %250 = vdwg.mxu0
    %v251 = vtanh.pop %v248
    %v252 = vpack.c.bf16 %v251, %v251
    %v253 = vrot.slane %v74, 7
    %v256 = vsel %vm60, %v252, 0
    %258 = vmatpush.bf16.msra.mxu0 0
    %259 = vmatpush.bf16.msra.mxu0 0
    %260 = vmatpush.bf16.msra.mxu0 0
    %261 = vmatpush.bf16.msra.mxu0 0
    %262 = vmatpush.bf16.msra.mxu0 %v102
    %263 = vmatpush.bf16.msra.mxu0 %v101
    %264 = vmatpush.bf16.msra.mxu0 %v100
    %265 = vmatpush.bf16.msra.mxu0 %v99
    %266 = vmatmul.bf16.gmra.mxu0 %v256
    %v267 = vpop.f32.mrf.mxu0
    %v268 = vadd.f32 %v253, %v267
    %v269 = vpop.f32.mrf.mxu0
    %270 = vdwg.mxu0
    %v271 = vtanh.pop %v268
    %v272 = vpack.c.bf16 %v271, %v271
    %v274 = vsel %vm60, %v272, 0
    %276 = vmatpush.bf16.msra.mxu0 0
    %277 = vmatpush.bf16.msra.mxu0 0
    %278 = vmatpush.bf16.msra.mxu0 0
    %279 = vmatpush.bf16.msra.mxu0 0
    %280 = vmatpush.bf16.msra.mxu0 %v102
    %281 = vmatpush.bf16.msra.mxu0 %v101
    %282 = vmatpush.bf16.msra.mxu0 %v100
    %283 = vmatpush.bf16.msra.mxu0 %v99
    %284 = vmatmul.bf16.gmra.mxu0 %v274
    %v285 = vpop.f32.mrf.mxu0
    %v286 = vadd.f32 %v76, %v285
    %v287 = vpop.f32.mrf.mxu0
    %288 = vdwg.mxu0
    %v289 = vtanh.pop %v286
    %vm290 = vcmp.ge.s32.totalorder %v79, 32
    %vm291 = vcmp.lt.s32.totalorder %v79, 64
    %vm292 = vmand %vm290, %vm291
    %v293 = vsel %vm292, %v289, %v271
    %vm294 = vcmask 516096
    %295 = vst.msk [vmem:[#allocation4] sm:$0x1] %vm294, %v293
    %v297 = vrot.slane %v171, 7
    %v300 = vrot.slane %v191, 6
    %v303 = vrot.slane %v211, 5
    %v306 = vrot.slane %v231, 4
    %v309 = vrot.slane %v251, 3
    %v312 = vrot.slane %v271, 2
    %v315 = vrot.slane %v289, 1
    %vm317 = vcmask 1040384
    %v318 = vsel %vm317, %v151, %v297
    %vm319 = vcmask 1041408
    %v320 = vsel %vm319, %v318, %v300
    %vm321 = vcmask 1042432
    %v322 = vsel %vm321, %v320, %v303
    %vm323 = vcmask 1043456
    %v324 = vsel %vm323, %v322, %v306
    %vm325 = vcmask 1044480
    %v326 = vsel %vm325, %v324, %v309
    %vm327 = vcmask 1045504
    %v328 = vsel %vm327, %v326, %v312
    %vm329 = vcmask 1046528
    %v330 = vsel %vm329, %v328, %v315
    %v331 = vrot.slane %v17, 3
    %333 = vrot.lane.b32.xlu0 %v330, 96
    %v334 = vpop.permute.xlu0 %333
    %v335 = vrot.slane %v17, 4
    %vm337 = vcmask 261120
    %v338 = vsel %vm337, %v331, 0
    %v340 = vsel %vm337, %v334, 0
    %342 = vmatpush.xpose.msra.mxu0 0.0
    %343 = vmatpush.xpose.msra.mxu0 0.0
    %344 = vmatpush.xpose.msra.mxu0 0.0
    %345 = vmatpush.xpose.msra.mxu0 0.0
    %346 = vmatpush.xpose.msra.mxu0 0.0
    %347 = vmatpush.xpose.msra.mxu0 0.0
    %348 = vmatpush.xpose.msra.mxu0 0.0
    %349 = vmatpush.xpose.msra.mxu0 0.0
    %350 = vmatpush.xpose.msra.mxu0 0.0
    %351 = vmatpush.xpose.msra.mxu0 0.0
    %352 = vmatpush.xpose.msra.mxu0 0.0
    %353 = vmatpush.xpose.msra.mxu0 0.0
    %354 = vmatpush.xpose.msra.mxu0 0.0
    %355 = vmatpush.xpose.msra.mxu0 0.0
    %356 = vmatpush.xpose.msra.mxu0 0.0
    %357 = vmatpush.xpose.msra.mxu0 %v340
    %358 = vmatmul.f32.gmra.mxu0 %v338
    %v359 = vpop.f32.mrf.mxu0
    %v360 = vadd.f32 %v335, %v359
    %361 = vdwg.mxu0
    %vm362 = vcmask 57344
    %363 = vst.msk [vmem:[#allocation2] sm:$0x1] %vm362, %v360
    // Predicated region
    $region10: #{tpu_custom_call.1} parent=1 // pred_check
      _
    $region11: #{tpu_custom_call.1} parent=1 // pred_check_branch
      %365 = sbr.rel (0) target = $region13
    $region12: #{tpu_custom_call.1} parent=1 // pred_region
      %367 = vsyncadd [#allocation3], 0
      %s369 = sshll.u32 [#allocation2], 4
      %s370 = int_to_ptr.vmem [resolvable:$true] %s369
      %s371 = sshll.u32 %s2, 4
      %s372 = int_to_ptr.hbm [resolvable:$true] %s371
      %374 = dma.vmem_to_hbm [thread:$0]  %s370, 16, %s372, [#allocation3]
    $region13: #{tpu_custom_call.1} parent=1 // pred_fallthru
      _
    // Predicated region
    $region14: #{tpu_custom_call.1} parent=1 // pred_check
      _
    $region15: #{tpu_custom_call.1} parent=1 // pred_check_branch
      %376 = sbr.rel (0) target = $region17
    $region16: #{tpu_custom_call.1} parent=1 // pred_region
      %378 = vsyncadd [#allocation5], 0
      %s380 = sshll.u32 [#allocation4], 4
      %s381 = int_to_ptr.vmem [resolvable:$true] %s380
      %s382 = sshll.u32 %s3, 4
      %s383 = int_to_ptr.hbm [resolvable:$true] %s382
      %385 = dma.vmem_to_hbm [thread:$0]  %s381, 16, %s383, [#allocation5]
    $region17: #{tpu_custom_call.1} parent=1 // pred_fallthru
      _
    // Predicated region
    $region18: #{tpu_custom_call.1} parent=1 // pred_check
      _
    $region19: #{tpu_custom_call.1} parent=1 // pred_check_branch
      %387 = sbr.rel (0) target = $region21
    $region20: #{tpu_custom_call.1} parent=1 // pred_region
      %389 = dma.done [#allocation3], 16
    $region21: #{tpu_custom_call.1} parent=1 // pred_fallthru
      _
    // Predicated region
    $region22: #{tpu_custom_call.1} parent=1 // pred_check
      _
    $region23: #{tpu_custom_call.1} parent=1 // pred_check_branch
      %391 = sbr.rel (0) target = $region25
    $region24: #{tpu_custom_call.1} parent=1 // pred_region
      %393 = dma.done [#allocation5], 16
    $region25: #{tpu_custom_call.1} parent=1 // pred_fallthru
      _
    %394 = vsyncpa [#allocation3], 1
    %395 = vsyncpa [#allocation5], 1

</llo_original>
